<compile_context>
chip_gen: v5e
topology: v5e:2x2
jax: 0.10.0
libtpu: 0.0.40
codegen_flags: <defaults>
</compile_context>

<pallas_src>
import numpy as np
import jax
import jax.numpy as jnp
from jax import lax
from jax.experimental import pallas as pl
from jax.experimental.pallas import tpu as pltpu

LANE = 128


def _round_up(x, m):
    return ((x + m - 1) // m) * m


def _compiler_params(semantics, vmem_need_bytes):
    phys = 64 << 20
    try:
        info = pltpu.get_tpu_info()
        phys = int(getattr(info, "vmem_capacity_bytes", phys) or phys)
    except Exception:
        pass
    cap = int(phys * 0.80)                      # headroom for compiler-internal scratch
    want = int(vmem_need_bytes) + (4 << 20)
    vmem = max(min(want, cap), min(32 << 20, cap))
    return pltpu.CompilerParams(dimension_semantics=semantics,
                                vmem_limit_bytes=int(vmem))


# --------------------------------- kernels -----------------------------------
def _init_kernel(fb_ref, wi_ref, inp_ref, msg_ref):
    """input = W_i(f_bonds) (bf16 x bf16 -> f32); message0 = ReLU(input) (f32)."""
    acc = jnp.dot(fb_ref[...], wi_ref[...], preferred_element_type=jnp.float32)
    inp_ref[...] = acc
    msg_ref[...] = jnp.maximum(acc, 0.0)


def _make_step_kernel(max_nb, tile_bonds):
    def step_kernel(idx_ref, msg_ref, inp_ref, wh_ref, out_ref, gat_ref):
        # idx_ref (SMEM, scalar-prefetch): rows 0..max_nb-1 = incoming bonds of the bond's
        # source atom, row max_nb = reverse bond (subtracted).  Padded entries point at
        # bond 0 whose message is guaranteed zero (chemprop padding convention).
        base = pl.program_id(0) * tile_bonds

        def gather_row(r, carry):
            b = base + r
            acc = -msg_ref[pl.ds(idx_ref[max_nb, b], 1), :]
            for j in range(max_nb):                       # deg is tiny -> static unroll
                acc = acc + msg_ref[pl.ds(idx_ref[j, b], 1), :]
            gat_ref[pl.ds(r, 1), :] = acc
            return carry

        lax.fori_loop(0, tile_bonds, gather_row, 0, unroll=min(8, tile_bonds))
        h = jnp.dot(gat_ref[...].astype(jnp.bfloat16), wh_ref[...],
                    preferred_element_type=jnp.float32)
        out_ref[...] = jnp.maximum(inp_ref[...] + h, 0.0).astype(out_ref.dtype)

    return step_kernel


def _make_atom_kernel(max_nb, tile_atoms):
    def atom_kernel(idx_ref, msg_ref, fa_ref, woa_ref, woh_ref, bo_ref, out_ref, gat_ref):
        base = pl.program_id(0) * tile_atoms

        def gather_row(r, carry):
            a = base + r
            acc = msg_ref[pl.ds(idx_ref[0, a], 1), :]
            for j in range(1, max_nb):
                acc = acc + msg_ref[pl.ds(idx_ref[j, a], 1), :]
            gat_ref[pl.ds(r, 1), :] = acc
            return carry

        lax.fori_loop(0, tile_atoms, gather_row, 0, unroll=min(8, tile_atoms))
        ah = (jnp.dot(fa_ref[...], woa_ref[...], preferred_element_type=jnp.float32)
              + jnp.dot(gat_ref[...].astype(jnp.bfloat16), woh_ref[...],
                        preferred_element_type=jnp.float32)
              + bo_ref[...])
        out_ref[...] = jnp.maximum(ah, 0.0).astype(out_ref.dtype)

    return atom_kernel


def _mol_kernel(scope_ref, ah_ref, inv_ref, out_ref):
    """Per-molecule mean readout: K-tiled 0/1 indicator matmul, 1/a_size scale at the end."""
    @pl.when(pl.program_id(1) == 0)
    def _():
        out_ref[...] = jnp.zeros_like(out_ref)

    out_ref[...] += jnp.dot(scope_ref[...], ah_ref[...], preferred_element_type=jnp.float32)

    @pl.when(pl.program_id(1) == pl.num_programs(1) - 1)
    def _():
        out_ref[...] = out_ref[...] * inv_ref[...]


# --------------------------------- wrapper -----------------------------------
def mpn_encoder_pallas(f_atoms, f_bonds, a2b, b2a, b2revb, a_scope,
                       Wi, Wh, Wo, bo, depth, *,
                       tile_bonds=256, tile_atoms=256, tile_mols=8):
    """MPNEncoder.forward (atom_messages=False, undirected=False, W_i/W_h bias=False)."""
    assert tile_bonds % 8 == 0
    assert tile_atoms % LANE == 0          # also the lane dim of the scope indicator block
    assert tile_mols % 8 == 0

    f_atoms = np.asarray(f_atoms, np.float32)
    f_bonds = np.asarray(f_bonds, np.float32)
    a2b = np.asarray(a2b, np.int64)
    b2a = np.asarray(b2a, np.int64)
    b2revb = np.asarray(b2revb, np.int64)
    Wi = np.asarray(Wi, np.float32)
    Wh = np.asarray(Wh, np.float32)
    Wo = np.asarray(Wo, np.float32)
    bo = np.asarray(bo, np.float32)

    na, atom_fdim = f_atoms.shape
    nb, bond_fdim = f_bonds.shape
    hidden = Wi.shape[0]
    n_mol = len(a_scope)
    max_nb = a2b.shape[1]
    assert max_nb >= 1
    # chemprop convention: bond 0 is the zero padding bond; a2b pads with 0, so message[0]
    # must stay exactly zero (it does: f_bonds[0] == 0 and W_i has no bias).
    assert not np.any(f_bonds[0]), "f_bonds[0] must be the zero padding-bond row"

    hp = _round_up(hidden, LANE)
    afd_p = _round_up(atom_fdim, LANE)
    bfd_p = _round_up(bond_fdim, LANE)
    nb_p = _round_up(nb, tile_bonds)
    na_p = _round_up(na, tile_atoms)
    nm_p = _round_up(n_mol, tile_mols)
    grid_b = nb_p // tile_bonds
    grid_a = na_p // tile_atoms
    grid_m = nm_p // tile_mols

    # ---- vectorized host prep: O(nb * max_nb) index tables, no dense nb x nb matrix ----
    step_idx = np.zeros((max_nb + 1, nb_p), np.int32)
    step_idx[:max_nb, :nb] = a2b[b2a].T            # incoming bonds of each bond's source atom
    step_idx[max_nb, :nb] = b2revb                 # reverse bond (subtracted)
    read_idx = np.zeros((max_nb, na_p), np.int32)
    read_idx[:, :na] = a2b.T                       # incoming bonds of each atom
    scope_ind = np.zeros((nm_p, na_p), np.float32)  # 0/1 indicator (exact in bf16)
    inv_size = np.ones((nm_p, 1), np.float32)       # 1/a_size (zero-size -> row of zeros)
    for i, (a_start, a_size) in enumerate(a_scope):
        if a_size > 0:
            scope_ind[i, a_start:a_start + a_size] = 1.0
            inv_size[i, 0] = 1.0 / a_size

    def pad2(x, r, c):
        out = np.zeros((r, c), np.float32)
        out[:x.shape[0], :x.shape[1]] = x
        return out

    f32, bf16, i32 = jnp.float32, jnp.bfloat16, jnp.int32
    f_bonds_d = jnp.asarray(pad2(f_bonds, nb_p, bfd_p), bf16)
    f_atoms_d = jnp.asarray(pad2(f_atoms, na_p, afd_p), bf16)
    wi_d = jnp.asarray(pad2(Wi.T, bfd_p, hp), bf16)
    wh_d = jnp.asarray(pad2(Wh.T, hp, hp), bf16)
    wo_a_d = jnp.asarray(pad2(Wo[:, :atom_fdim].T, afd_p, hp), bf16)
    wo_h_d = jnp.asarray(pad2(Wo[:, atom_fdim:].T, hp, hp), bf16)
    bo_d = jnp.asarray(pad2(bo.reshape(1, -1), 1, hp), f32)
    scope_d = jnp.asarray(scope_ind, bf16)
    inv_d = jnp.asarray(inv_size, f32)
    step_idx_d = jnp.asarray(step_idx, i32)
    read_idx_d = jnp.asarray(read_idx, i32)

    vmem_full = lambda: pl.BlockSpec(memory_space=pltpu.VMEM)   # untiled -> single buffer

    # ---- kernel 1: input = W_i(f_bonds), message0 = ReLU(input) ---------------------------
    need = 2 * tile_bonds * bfd_p * 2 + bfd_p * hp * 2 + 4 * tile_bonds * hp * 4
    inp, message = pl.pallas_call(
        _init_kernel,
        grid=(grid_b,),
        in_specs=[pl.BlockSpec((tile_bonds, bfd_p), lambda i: (i, 0)),
                  vmem_full()],                               # W_i
        out_specs=(pl.BlockSpec((tile_bonds, hp), lambda i: (i, 0)),
                   pl.BlockSpec((tile_bonds, hp), lambda i: (i, 0))),
        out_shape=(jax.ShapeDtypeStruct((nb_p, hp), f32),
                   jax.ShapeDtypeStruct((nb_p, hp), f32)),
        compiler_params=_compiler_params(("parallel",), need),
        cost_estimate=pl.CostEstimate(
            flops=2 * nb_p * bfd_p * hp, transcendentals=0,
            bytes_accessed=nb_p * bfd_p * 2 + bfd_p * hp * 2 + nb_p * hp * 8),
    )(f_bonds_d, wi_d)

    # ---- kernels 2..depth: gather/segment-sum + W_h per depth step ------------------------
    step_kernel = _make_step_kernel(max_nb, tile_bonds)
    need = (nb_p * hp * 4 + hp * hp * 2
            + 2 * tile_bonds * hp * 4 + 2 * tile_bonds * hp * 4 + tile_bonds * hp * 4)
    step_call = pl.pallas_call(
        step_kernel,
        grid_spec=pltpu.PrefetchScalarGridSpec(
            num_scalar_prefetch=1,
            grid=(grid_b,),
            in_specs=[vmem_full(),                                        # full prev message
                      pl.BlockSpec((tile_bonds, hp), lambda i, idx: (i, 0)),  # residual inp
                      vmem_full()],                                       # W_h (bf16)
            out_specs=pl.BlockSpec((tile_bonds, hp), lambda i, idx: (i, 0)),
            scratch_shapes=[pltpu.VMEM((tile_bonds, hp), f32)]),
        out_shape=jax.ShapeDtypeStruct((nb_p, hp), f32),
        compiler_params=_compiler_params(("parallel",), need),
        cost_estimate=pl.CostEstimate(
            flops=2 * nb_p * hp * hp + 2 * nb_p * (max_nb + 1) * hp,
            transcendentals=0,
            bytes_accessed=nb_p * hp * 12 + hp * hp * 2 + (max_nb + 1) * nb_p * 4),
    )
    for _ in range(depth - 1):
        message = step_call(step_idx_d, message, inp, wh_d)

    # ---- kernel 3a: atom aggregation + W_o + ReLU (parallel over atom tiles) --------------
    atom_kernel = _make_atom_kernel(max_nb, tile_atoms)
    need = (nb_p * hp * 4 + 2 * tile_atoms * afd_p * 2 + (afd_p + hp) * hp * 2 + hp * 4
            + 2 * tile_atoms * hp * 2 + tile_atoms * hp * 4)
    atom_h = pl.pallas_call(
        atom_kernel,
        grid_spec=pltpu.PrefetchScalarGridSpec(
            num_scalar_prefetch=1,
            grid=(grid_a,),
            in_specs=[vmem_full(),                                         # final message
                      pl.BlockSpec((tile_atoms, afd_p), lambda i, idx: (i, 0)),
                      vmem_full(),                                         # W_o (atom part)
                      vmem_full(),                                         # W_o (hidden part)
                      vmem_full()],                                        # b_o
            out_specs=pl.BlockSpec((tile_atoms, hp), lambda i, idx: (i, 0)),
            scratch_shapes=[pltpu.VMEM((tile_atoms, hp), f32)]),
        out_shape=jax.ShapeDtypeStruct((na_p, hp), bf16),
        compiler_params=_compiler_params(("parallel",), need),
        cost_estimate=pl.CostEstimate(
            flops=2 * na_p * hp * (afd_p + hp) + 2 * na_p * max_nb * hp,
            transcendentals=0,
            bytes_accessed=nb_p * hp * 4 + na_p * (afd_p + hp) * 2
                           + (afd_p + hp) * hp * 2 + max_nb * na_p * 4),
    )(read_idx_d, message, f_atoms_d, wo_a_d, wo_h_d, bo_d)

    # ---- kernel 3b: per-molecule mean (parallel mol tiles, K-tiled atom contraction) ------
    need = (2 * tile_mols * tile_atoms * 2 + 2 * tile_atoms * hp * 2
            + 2 * tile_mols * 4 + 2 * tile_mols * hp * 4)
    out = pl.pallas_call(
        _mol_kernel,
        grid=(grid_m, grid_a),
        in_specs=[pl.BlockSpec((tile_mols, tile_atoms), lambda m, k: (m, k)),
                  pl.BlockSpec((tile_atoms, hp), lambda m, k: (k, 0)),
                  pl.BlockSpec((tile_mols, 1), lambda m, k: (m, 0))],
        out_specs=pl.BlockSpec((tile_mols, hp), lambda m, k: (m, 0)),
        out_shape=jax.ShapeDtypeStruct((nm_p, hp), f32),
        compiler_params=_compiler_params(("parallel", "arbitrary"), need),
        cost_estimate=pl.CostEstimate(
            flops=2 * nm_p * na_p * hp, transcendentals=0,
            bytes_accessed=nm_p * na_p * 2 + na_p * hp * 2 + nm_p * 4 + nm_p * hp * 4),
    )(scope_d, atom_h, inv_d)

    return out[:n_mol, :hidden]


# ------------------------- reference (pure numpy, mirrors PyTorch) -----------------------
def mpn_encoder_ref(f_atoms, f_bonds, a2b, b2a, b2revb, a_scope, Wi, Wh, Wo, bo, depth):
    inp = f_bonds @ Wi.T
    message = np.maximum(inp, 0.0)
    for _ in range(depth - 1):
        nei_a_message = message[a2b]
        a_message = nei_a_message.sum(axis=1)
        rev_message = message[b2revb]
        message = a_message[b2a] - rev_message
        message = message @ Wh.T
        message = np.maximum(inp + message, 0.0)
    nei_a_message = message[a2b]
    a_message = nei_a_message.sum(axis=1)
    a_input = np.concatenate([f_atoms, a_message], axis=1)
    atom_hiddens = np.maximum(a_input @ Wo.T + bo, 0.0)
    mol_vecs = []
    for (a_start, a_size) in a_scope:
        if a_size == 0:
            mol_vecs.append(np.zeros(atom_hiddens.shape[1], np.float32))
        else:
            mol_vecs.append(atom_hiddens[a_start:a_start + a_size].sum(0) / a_size)
    return np.stack(mol_vecs, axis=0)


# ------------------------- synthetic graph construction ----------------------------------
def build_batch_graph():
    # molecule 0: 3 atoms, chain 0-1-2 ; molecule 1: 4 atoms, edges 0-1,1-2,2-3,1-3
    mols = [
        (3, [(0, 1), (1, 2)]),
        (4, [(0, 1), (1, 2), (2, 3), (1, 3)]),
    ]
    a_scope = []
    b2a, b2revb = [0], [0]          # index 0 = padding bond
    incoming = {0: []}              # atom -> incoming directed bonds
    atom_off = 1                    # index 0 = padding atom
    for n_atoms, edges in mols:
        a_scope.append((atom_off, n_atoms))
        for a in range(n_atoms):
            incoming.setdefault(atom_off + a, [])
        for (u, v) in edges:
            gu, gv = atom_off + u, atom_off + v
            b1 = len(b2a); b2a.append(gu); incoming[gv].append(b1)   # u -> v
            b2 = len(b2a); b2a.append(gv); incoming[gu].append(b2)   # v -> u
            b2revb += [b2, b1]
        atom_off += n_atoms
    n_atoms_total = atom_off
    max_num_bonds = max(len(v) for v in incoming.values())
    a2b = np.zeros((n_atoms_total, max_num_bonds), dtype=np.int64)
    for a, blist in incoming.items():
        a2b[a, :len(blist)] = blist
    return (n_atoms_total, len(b2a), a2b,
            np.array(b2a, np.int64), np.array(b2revb, np.int64), a_scope)


if __name__ == "__main__":
    atom_fdim, bond_fdim, hidden, depth = 16, 24, 32, 3
    na, nb, a2b, b2a, b2revb, a_scope = build_batch_graph()

    key = jax.random.PRNGKey(0)
    k_fa, k_fb, k_wi, k_wh, k_wo, k_bo = jax.random.split(key, 6)

    f_atoms = jax.random.normal(k_fa, (na, atom_fdim), jnp.float32)
    f_atoms = f_atoms.at[0].set(0.0)                  # padding atom row is zero
    f_bonds = jax.random.normal(k_fb, (nb, bond_fdim), jnp.float32)
    f_bonds = f_bonds.at[0].set(0.0)                  # padding bond row is zero
    f_atoms_np = np.asarray(f_atoms)
    f_bonds_np = np.asarray(f_bonds)

    Wi = np.asarray(jax.random.normal(k_wi, (hidden, bond_fdim), jnp.float32)) * 0.1
    Wh = np.asarray(jax.random.normal(k_wh, (hidden, hidden), jnp.float32)) * 0.1
    Wo = np.asarray(jax.random.normal(k_wo, (hidden, atom_fdim + hidden), jnp.float32)) * 0.1
    bo = np.asarray(jax.random.normal(k_bo, (hidden,), jnp.float32)) * 0.1

    # small tiles so the tiny demo graph still exercises a multi-tile "parallel" bond grid
    out = mpn_encoder_pallas(f_atoms_np, f_bonds_np, a2b, b2a, b2revb, a_scope,
                             Wi, Wh, Wo, bo, depth,
                             tile_bonds=8, tile_atoms=128, tile_mols=8)
    out = np.asarray(jax.block_until_ready(out))

    ref = mpn_encoder_ref(f_atoms_np, f_bonds_np, a2b, b2a, b2revb, a_scope,
                          Wi, Wh, Wo, bo, depth)
    # features / weights / matmul operands are bf16 (f32 accumulation), so allow
    # bf16-level deviation from the pure-f32 reference.
    np.testing.assert_allclose(out, ref, rtol=5e-2, atol=2e-2)
    print("KERNEL_OK")
</pallas_src>

<mosaic_0001>
module attributes {stable_mosaic.version = 11 : i64} {
  func.func @_init_kernel(%arg0: i32, %arg1: memref<8x128xbf16, #tpu.memory_space<vmem>>, %arg2: memref<128x128xbf16, #tpu.memory_space<vmem>>, %arg3: memref<8x128xf32, #tpu.memory_space<vmem>>, %arg4: memref<8x128xf32, #tpu.memory_space<vmem>>) attributes {dimension_semantics = [#tpu.dimension_semantics<parallel>], iteration_bounds = array<i64: 2>, scalar_prefetch = 0 : i64, scratch_operands = 0 : i64, tpu.core_type = #tpu.core_type<tc>, window_params = [{transform_indices = @transform_0, window_bounds = array<i64: 8, 128>}, {pipeline_mode = #tpu.pipeline_mode<synchronous>, transform_indices = @transform_1, window_bounds = array<i64: 128, 128>}, {transform_indices = @transform_2, window_bounds = array<i64: 8, 128>}, {transform_indices = @transform_3, window_bounds = array<i64: 8, 128>}]} {
    %c0 = arith.constant 0 : index
    %c0_0 = arith.constant 0 : index
    %0 = vector.load %arg1[%c0, %c0_0] : memref<8x128xbf16, #tpu.memory_space<vmem>>, vector<8x128xbf16>
    %c0_1 = arith.constant 0 : index
    %c0_2 = arith.constant 0 : index
    %1 = vector.load %arg2[%c0_1, %c0_2] : memref<128x128xbf16, #tpu.memory_space<vmem>>, vector<128x128xbf16>
    %cst = arith.constant dense<0.000000e+00> : vector<8x128xf32>
    %2 = tpu.matmul %0, %1, %cst {dimension_numbers = #tpu.dot_dimension_numbers<[1], [0], [0], [1], [0, 0, 1, 1], [], []>} : vector<8x128xbf16>, vector<128x128xbf16>, vector<8x128xf32> -> vector<8x128xf32>
    %c0_3 = arith.constant 0 : index
    %c0_4 = arith.constant 0 : index
    %3 = vector.load %arg3[%c0_3, %c0_4] : memref<8x128xf32, #tpu.memory_space<vmem>>, vector<8x128xf32>
    tpu.vector_store %arg3[%c0_3, %c0_4], %2 {strides = array<i32>} : memref<8x128xf32, #tpu.memory_space<vmem>>, vector<8x128xf32>,
    %cst_5 = arith.constant 0.000000e+00 : f32
    %4 = vector.broadcast %cst_5 : f32 to vector<8x128xf32>
    %5 = arith.maximumf %2, %4 : vector<8x128xf32>
    %c0_6 = arith.constant 0 : index
    %c0_7 = arith.constant 0 : index
    %6 = vector.load %arg4[%c0_6, %c0_7] : memref<8x128xf32, #tpu.memory_space<vmem>>, vector<8x128xf32>
    tpu.vector_store %arg4[%c0_6, %c0_7], %5 {strides = array<i32>} : memref<8x128xf32, #tpu.memory_space<vmem>>, vector<8x128xf32>,
    return
  }
  func.func @transform_0(%arg0: i32) -> (i32, i32) {
    %c0_i32 = arith.constant 0 : i32
    %c0_i32_0 = arith.constant 0 : i32
    return %arg0, %c0_i32 : i32, i32
  }
  func.func @transform_1(%arg0: i32) -> (i32, i32) {
    %c0_i32 = arith.constant 0 : i32
    %c0_i32_0 = arith.constant 0 : i32
    %c0_i32_1 = arith.constant 0 : i32
    return %c0_i32, %c0_i32_0 : i32, i32
  }
  func.func @transform_2(%arg0: i32) -> (i32, i32) {
    %c0_i32 = arith.constant 0 : i32
    %c0_i32_0 = arith.constant 0 : i32
    return %arg0, %c0_i32 : i32, i32
  }
  func.func @transform_3(%arg0: i32) -> (i32, i32) {
    %c0_i32 = arith.constant 0 : i32
    %c0_i32_0 = arith.constant 0 : i32
    return %arg0, %c0_i32 : i32, i32
  }
}

</mosaic_0001>

<llo_original>
// kernel: tpu_custom_call.1
$region0: #{tpu_custom_call.1}
  #allocation0 [shape = 'u32[]', space=smem, size = 0x4, offset = 0x4, fixed_abs, tag = 'smem constant byte address 0x4 - core index']
  #allocation1 [shape = 'u32[72,128]{1,0:T(1,128)}', space=vmem, size = 0x9000, scoped, tag = 'internal scratch']
  %s0 = inlined_call_operand.hbm [shape: bf16[16,128], index: 0, kind: input, shape index: {}]
  %s1 = inlined_call_operand.hbm [shape: bf16[128,128], index: 1, kind: input, shape index: {}]
  %s2 = inlined_call_operand.hbm [shape: f32[16,128], index: 2, kind: output, shape index: {0}]
  %s3 = inlined_call_operand.hbm [shape: f32[16,128], index: 3, kind: output, shape index: {1}]
  %4 = xla_tuple %s2, %s3
  %s5 = sld [smem:[#allocation0]]
  $region57: #{tpu_custom_call.1} parent=0
    _
  %s7 = ssub.s32 1, %s5
  %s8 = scalar_select 0, %s7, %s5
  $region1: #{tpu_custom_call.1} parent=0
    #allocation2 [shape = 'u8[4096]{0}', space=vmem, size = 0x1000, scoped, tag = 'input window, operand 0']
    #allocation3 [shape = 's32[2]{0}', space=sflag, size = 0x8, scoped, tag = 'scoped memory for tpu_custom_call.1']
    #allocation4 [shape = 's32[2]{0}', space=sflag, size = 0x8, scoped, tag = 'scoped memory for tpu_custom_call.1']
    #allocation5 [shape = 'u8[32768]{0}', space=vmem, size = 0x8000, scoped, tag = 'input window, operand 1, single buffered']
    #allocation6 [shape = 's32[1]{0}', space=sflag, size = 0x4, scoped, tag = 'scoped memory for tpu_custom_call.1']
    #allocation7 [shape = 'u8[8192]{0}', space=vmem, size = 0x2000, scoped, tag = 'output window, operand 0']
    #allocation8 [shape = 'u8[8192]{0}', space=vmem, size = 0x2000, scoped, tag = 'output window, operand 1']
    #allocation9 [shape = 's32[2]{0}', space=sflag, size = 0x8, scoped, tag = 'scoped memory for tpu_custom_call.1']
    %9 = vsyncpa [#allocation3], 0
    %s10 = scalar_lea.sflag [#allocation3], 1
    %11 = vsyncpa %s10, 0
    %12 = vsyncpa [#allocation6], 0
    %13 = vsyncpa [#allocation4], 0
    %s14 = scalar_lea.sflag [#allocation4], 1
    %15 = vsyncpa %s14, 0
    %16 = vsyncpa [#allocation9], 0
    %s17 = scalar_lea.sflag [#allocation9], 1
    %18 = vsyncpa %s17, 0
    loop: start=0, step=1, limit=4
    $region2: #{tpu_custom_call.1} parent=1 // loop_pre_header
      _
    $region3: #{tpu_custom_call.1} parent=1 // loop_header
      %s20 = sphi 0, %s24
      %p21 = scmp.ge.s32.totalorder %s20, 4
      %s30 = sphi 0, %s32
      %s33 = sphi 0, %s30
      %s34 = sphi 0, %s33
      %s50 = sphi 0, %s34
      %s54 = sphi 0, %s54
      %s56 = sphi 0, %s54
      %s57 = sphi 0, %s56
      %s71 = sphi 0, %s57
      %s77 = sphi 0, %s79
      %s80 = sphi 0, %s77
      %s81 = sphi 0, %s80
      %s97 = sphi 0, %s81
      %s103 = sphi 0, %s105
      %s106 = sphi 0, %s103
      %s107 = sphi 0, %s106
      %s123 = sphi 0, %s107
    $region4: #{tpu_custom_call.1} parent=1 // loop_header_branch
      %23 = sbr.rel (%p21) target = $region8
    $region5: #{tpu_custom_call.1} parent=1 // loop_body
      %s25 = ssub.s32 %s20, 1
      %s26 = ssub.s32 %s20, 2
      %s27 = sadd.s32 %s20, 1
      %s28 = ssub.s32 %s20, %s27
      %p29 = scmp.eq.s32.totalorder %s28, 0
      %s31 = sadd.s32 %s30, 1
      %s32 = scalar_select %p29, %s30, %s31
      %p35 = pneg %p29
      %p36 = scmp.eq.s32.totalorder %s20, 1
      %p37 = por %p35, %p36
      %p38 = scmp.ne.s32.totalorder %s30, %s33
      %p39 = scmp.eq.s32.totalorder %s20, 0
      %p40 = por %p38, %p39
      %p41 = scmp.ne.s32.totalorder %s30, %s33
      %p42 = scmp.eq.s32.totalorder %s25, 1
      %p43 = por %p41, %p42
      %p44 = scmp.ne.s32.totalorder %s33, %s34
      %p45 = scmp.eq.s32.totalorder %s25, 0
      %p46 = por %p44, %p45
      %p47 = scmp.ne.s32.totalorder %s33, %s34
      %p48 = scmp.eq.s32.totalorder %s26, 1
      %p49 = por %p47, %p48
      %p51 = scmp.ne.s32.totalorder %s34, %s50
      %p52 = scmp.eq.s32.totalorder %s26, 0
      %p53 = por %p51, %p52
      %s55 = sadd.s32 %s54, 1
      %p58 = scmp.eq.s32.totalorder %s20, 1
      %p59 = scmp.ne.s32.totalorder %s54, %s56
      %p60 = scmp.eq.s32.totalorder %s20, 0
      %p61 = por %p59, %p60
      %p62 = scmp.ne.s32.totalorder %s54, %s56
      %p63 = scmp.eq.s32.totalorder %s25, 1
      %p64 = por %p62, %p63
      %p65 = scmp.ne.s32.totalorder %s56, %s57
      %p66 = scmp.eq.s32.totalorder %s25, 0
      %p67 = por %p65, %p66
      %p68 = scmp.ne.s32.totalorder %s56, %s57
      %p69 = scmp.eq.s32.totalorder %s26, 1
      %p70 = por %p68, %p69
      %p72 = scmp.ne.s32.totalorder %s57, %s71
      %p73 = scmp.eq.s32.totalorder %s26, 0
      %p74 = por %p72, %p73
      %s75 = ssub.s32 %s20, %s27
      %p76 = scmp.eq.s32.totalorder %s75, 0
      %s78 = sadd.s32 %s77, 1
      %s79 = scalar_select %p76, %s77, %s78
      %p82 = pneg %p76
      %p83 = scmp.eq.s32.totalorder %s20, 1
      %p84 = por %p82, %p83
      %p85 = scmp.ne.s32.totalorder %s77, %s80
      %p86 = scmp.eq.s32.totalorder %s20, 0
      %p87 = por %p85, %p86
      %p88 = scmp.ne.s32.totalorder %s77, %s80
      %p89 = scmp.eq.s32.totalorder %s25, 1
      %p90 = por %p88, %p89
      %p91 = scmp.ne.s32.totalorder %s80, %s81
      %p92 = scmp.eq.s32.totalorder %s25, 0
      %p93 = por %p91, %p92
      %p94 = scmp.ne.s32.totalorder %s80, %s81
      %p95 = scmp.eq.s32.totalorder %s26, 1
      %p96 = por %p94, %p95
      %p98 = scmp.ne.s32.totalorder %s81, %s97
      %p99 = scmp.eq.s32.totalorder %s26, 0
      %p100 = por %p98, %p99
      %s101 = ssub.s32 %s20, %s27
      %p102 = scmp.eq.s32.totalorder %s101, 0
      %s104 = sadd.s32 %s103, 1
      %s105 = scalar_select %p102, %s103, %s104
      %p108 = pneg %p102
      %p109 = scmp.eq.s32.totalorder %s20, 1
      %p110 = por %p108, %p109
      %p111 = scmp.ne.s32.totalorder %s103, %s106
      %p112 = scmp.eq.s32.totalorder %s20, 0
      %p113 = por %p111, %p112
      %p114 = scmp.ne.s32.totalorder %s103, %s106
      %p115 = scmp.eq.s32.totalorder %s25, 1
      %p116 = por %p114, %p115
      %p117 = scmp.ne.s32.totalorder %s106, %s107
      %p118 = scmp.eq.s32.totalorder %s25, 0
      %p119 = por %p117, %p118
      %p120 = scmp.ne.s32.totalorder %s106, %s107
      %p121 = scmp.eq.s32.totalorder %s26, 1
      %p122 = por %p120, %p121
      %p124 = scmp.ne.s32.totalorder %s107, %s123
      %p125 = scmp.eq.s32.totalorder %s26, 0
      %p126 = por %p124, %p125
      %p127 = scmp.le.s32.totalorder 1, %s20
      %p128 = scmp.lt.s32.totalorder %s20, 3
      %p129 = pnand %p127, %p128
      %p130 = pneg %p129
      // Predicated region
      $region9: #{tpu_custom_call.1} parent=5 // pred_check
        _
      $region10: #{tpu_custom_call.1} parent=5 // pred_check_branch
        %132 = sbr.rel (%p129) target = $region12
      $region11: #{tpu_custom_call.1} parent=5 // pred_region
        %s133 = ssub.s32 %s20, 1
        // Predicated region
        $region13: #{tpu_custom_call.1} parent=11 // pred_check
          %p134 = pneg %p67
        $region14: #{tpu_custom_call.1} parent=11 // pred_check_branch
          %136 = sbr.rel (%p134) target = $region16
        $region15: #{tpu_custom_call.1} parent=11 // pred_region
          %138 = vsyncadd [#allocation6], 0
          %s139 = sshll.u32 %s1, 4
          %s140 = int_to_ptr.hbm [resolvable:$true] %s139
          %s141 = sshll.u32 [#allocation5], 4
          %s142 = int_to_ptr.vmem [resolvable:$true] %s141
          %147 = dma.hbm_to_vmem [thread:$0]  %s140, 1024, %s142, [#allocation6], 64, 64, 4
        $region16: #{tpu_custom_call.1} parent=11 // pred_fallthru
          _
      $region12: #{tpu_custom_call.1} parent=5 // pred_fallthru
        _
      %p148 = scmp.lt.s32.totalorder %s20, 2
      // Predicated region
      $region17: #{tpu_custom_call.1} parent=5 // pred_check
        %p149 = pneg %p148
      $region18: #{tpu_custom_call.1} parent=5 // pred_check_branch
        %151 = sbr.rel (%p149) target = $region20
      $region19: #{tpu_custom_call.1} parent=5 // pred_region
        // Predicated region
        $region21: #{tpu_custom_call.1} parent=19 // pred_check
          %p152 = pneg %p40
        $region22: #{tpu_custom_call.1} parent=19 // pred_check_branch
          %154 = sbr.rel (%p152) target = $region24
        $region23: #{tpu_custom_call.1} parent=19 // pred_region
          %s155 = sand.u32 %s30, 1
          %s156 = scalar_lea.sflag [#allocation3], %s155
          %s157 = sand.u32 %s30, 1
          %s158 = smul.addr %s157, 4
          %s159 = scalar_lea.vmem [#allocation2], %s158
          %161 = vsyncadd %s156, 0
          %s162 = smul.addr %s20, 4
          %s163 = scalar_lea.hbm %s0, %s162
          %s165 = sshll.u32 %s163, 4
          %s166 = int_to_ptr.hbm [resolvable:$true] %s165
          %s167 = sshll.u32 %s159, 4
          %s168 = int_to_ptr.vmem [resolvable:$true] %s167
          %170 = dma.hbm_to_vmem [thread:$0]  %s166, 64, %s168, %s156
        $region24: #{tpu_custom_call.1} parent=19 // pred_fallthru
          _
      $region20: #{tpu_custom_call.1} parent=5 // pred_fallthru
        _
      %p171 = scmp.le.s32.totalorder 1, %s20
      %p172 = scmp.lt.s32.totalorder %s20, 3
      %p173 = pnand %p171, %p172
      %p174 = pneg %p173
      // Predicated region
      $region25: #{tpu_custom_call.1} parent=5 // pred_check
        _
      $region26: #{tpu_custom_call.1} parent=5 // pred_check_branch
        %176 = sbr.rel (%p173) target = $region28
      $region27: #{tpu_custom_call.1} parent=5 // pred_region
        %s177 = ssub.s32 %s20, 1
        %s178 = sand.u32 %s33, 1
        %s179 = scalar_lea.sflag [#allocation3], %s178
        %s180 = sand.u32 %s33, 1
        %s181 = smul.addr %s180, 4
        %s182 = scalar_lea.vmem [#allocation2], %s181
        // Predicated region
        $region29: #{tpu_custom_call.1} parent=27 // pred_check
          %p183 = pneg %p46
        $region30: #{tpu_custom_call.1} parent=27 // pred_check_branch
          %185 = sbr.rel (%p183) target = $region32
        $region31: #{tpu_custom_call.1} parent=27 // pred_region
          %187 = dma.done %s179, 64
        $region32: #{tpu_custom_call.1} parent=27 // pred_fallthru
          _
        // Predicated region
        $region33: #{tpu_custom_call.1} parent=27 // pred_check
          %p188 = pneg %p67
        $region34: #{tpu_custom_call.1} parent=27 // pred_check_branch
          %190 = sbr.rel (%p188) target = $region36
        $region35: #{tpu_custom_call.1} parent=27 // pred_region
          %192 = dma.done [#allocation6], 1024
        $region36: #{tpu_custom_call.1} parent=27 // pred_fallthru
          _
        %s193 = sand.u32 %s33, 1
        %s194 = scalar_lea.sflag [#allocation3], %s193
        %s195 = sand.u32 %s33, 1
        %s196 = smul.addr %s195, 4
        %s197 = scalar_lea.vmem [#allocation2], %s196
        %p198 = pneg %p46
        %p199 = pneg %p43
        %p200 = pneg %p67
        %p201 = pneg %p64
        %p202 = pneg %p93
        %p203 = pneg %p90
        %s204 = sand.u32 %s80, 1
        %s205 = scalar_lea.sflag [#allocation4], %s204
        %s206 = sand.u32 %s80, 1
        %s207 = smul.addr %s206, 8
        %s208 = scalar_lea.vmem [#allocation7], %s207
        %p209 = pneg %p119
        %p210 = pneg %p116
        %s211 = sand.u32 %s106, 1
        %s212 = scalar_lea.sflag [#allocation9], %s211
        %s213 = sand.u32 %s106, 1
        %s214 = smul.addr %s213, 8
        %s215 = scalar_lea.vmem [#allocation8], %s214
        %v216 = vld [vmem:[%s182] sm:$0xf]
        %v217 = vld [vmem:[#allocation5] sm:$0xf]
        %v218 = vld [vmem:[#allocation5 + $0x4] sm:$0xf]
        %v219 = vld [vmem:[#allocation5 + $0x8] sm:$0xf]
        %v220 = vld [vmem:[#allocation5 + $0xc] sm:$0xf]
        %v221 = vld [vmem:[#allocation5 + $0x10] sm:$0xf]
        %v222 = vld [vmem:[#allocation5 + $0x14] sm:$0xf]
        %v223 = vld [vmem:[#allocation5 + $0x18] sm:$0xf]
        %v224 = vld [vmem:[#allocation5 + $0x1c] sm:$0xf]
        %v225 = vld [vmem:[#allocation5 + $0x20] sm:$0xf]
        %v226 = vld [vmem:[#allocation5 + $0x24] sm:$0xf]
        %v227 = vld [vmem:[#allocation5 + $0x28] sm:$0xf]
        %v228 = vld [vmem:[#allocation5 + $0x2c] sm:$0xf]
        %v229 = vld [vmem:[#allocation5 + $0x30] sm:$0xf]
        %v230 = vld [vmem:[#allocation5 + $0x34] sm:$0xf]
        %v231 = vld [vmem:[#allocation5 + $0x38] sm:$0xf]
        %v232 = vld [vmem:[#allocation5 + $0x3c] sm:$0xf]
        %v249 = vunpack.c.l.b16 %v217
        %v250 = vunpack.c.l.b16 %v218
        %v251 = vunpack.c.l.b16 %v219
        %v252 = vunpack.c.l.b16 %v220
        %v253 = vunpack.c.l.b16 %v221
        %v254 = vunpack.c.l.b16 %v222
        %v255 = vunpack.c.l.b16 %v223
        %v256 = vunpack.c.l.b16 %v224
        %v257 = vunpack.c.l.b16 %v225
        %v258 = vunpack.c.l.b16 %v226
        %v259 = vunpack.c.l.b16 %v227
        %v260 = vunpack.c.l.b16 %v228
        %v261 = vunpack.c.l.b16 %v229
        %v262 = vunpack.c.l.b16 %v230
        %v263 = vunpack.c.l.b16 %v231
        %v264 = vunpack.c.l.b16 %v232
        %v265 = vpack.c.b16 %v250, %v249
        %v266 = vpack.c.b16 %v252, %v251
        %v267 = vpack.c.b16 %v254, %v253
        %v268 = vpack.c.b16 %v256, %v255
        %v269 = vpack.c.b16 %v258, %v257
        %v270 = vpack.c.b16 %v260, %v259
        %v271 = vpack.c.b16 %v262, %v261
        %v272 = vpack.c.b16 %v264, %v263
        %281 = vmatpush.bf16.msra.mxu0 %v272
        %282 = vmatpush.bf16.msra.mxu0 %v271
        %283 = vmatpush.bf16.msra.mxu0 %v270
        %284 = vmatpush.bf16.msra.mxu0 %v269
        %285 = vmatpush.bf16.msra.mxu0 %v268
        %286 = vmatpush.bf16.msra.mxu0 %v267
        %287 = vmatpush.bf16.msra.mxu0 %v266
        %288 = vmatpush.bf16.msra.mxu0 %v265
        %289 = vmatmul.bf16.gmra.mxu0 %v216
        %v290 = vpop.f32.mrf.mxu0
        %v291 = vadd.f32 0.0, %v290
        %v292 = vpop.f32.mrf.mxu0
        %293 = vdwg.mxu0
        %294 = vst [vmem:[%s208] sm:$0xff] %v291
        %v295 = vmax.f32 %v291, 0.0
        %296 = vst [vmem:[%s215] sm:$0xff] %v295
        %s297 = sand.u32 %s80, 1
        %s298 = scalar_lea.sflag [#allocation4], %s297
        %s299 = sand.u32 %s80, 1
        %s300 = smul.addr %s299, 8
        %s301 = scalar_lea.vmem [#allocation7], %s300
        %s302 = sand.u32 %s106, 1
        %s303 = scalar_lea.sflag [#allocation9], %s302
        %s304 = sand.u32 %s106, 1
        %s305 = smul.addr %s304, 8
        %s306 = scalar_lea.vmem [#allocation8], %s305
        // Predicated region
        $region37: #{tpu_custom_call.1} parent=27 // pred_check
          %p307 = pneg %p90
        $region38: #{tpu_custom_call.1} parent=27 // pred_check_branch
          %309 = sbr.rel (%p307) target = $region40
        $region39: #{tpu_custom_call.1} parent=27 // pred_region
          %311 = vsyncadd %s298, 0
          %s312 = smul.addr %s25, 8
          %s313 = scalar_lea.hbm %s2, %s312
          %s315 = sshll.u32 %s301, 4
          %s316 = int_to_ptr.vmem [resolvable:$true] %s315
          %s317 = sshll.u32 %s313, 4
          %s318 = int_to_ptr.hbm [resolvable:$true] %s317
          %320 = dma.vmem_to_hbm [thread:$0]  %s316, 128, %s318, %s298
        $region40: #{tpu_custom_call.1} parent=27 // pred_fallthru
          _
        // Predicated region
        $region41: #{tpu_custom_call.1} parent=27 // pred_check
          %p321 = pneg %p116
        $region42: #{tpu_custom_call.1} parent=27 // pred_check_branch
          %323 = sbr.rel (%p321) target = $region44
        $region43: #{tpu_custom_call.1} parent=27 // pred_region
          %325 = vsyncadd %s303, 0
          %s326 = smul.addr %s25, 8
          %s327 = scalar_lea.hbm %s3, %s326
          %s329 = sshll.u32 %s306, 4
          %s330 = int_to_ptr.vmem [resolvable:$true] %s329
          %s331 = sshll.u32 %s327, 4
          %s332 = int_to_ptr.hbm [resolvable:$true] %s331
          %334 = dma.vmem_to_hbm [thread:$0]  %s330, 128, %s332, %s303
        $region44: #{tpu_custom_call.1} parent=27 // pred_fallthru
          _
      $region28: #{tpu_custom_call.1} parent=5 // pred_fallthru
        _
      %p335 = scmp.le.s32.totalorder 2, %s20
      // Predicated region
      $region45: #{tpu_custom_call.1} parent=5 // pred_check
        %p336 = pneg %p335
      $region46: #{tpu_custom_call.1} parent=5 // pred_check_branch
        %338 = sbr.rel (%p336) target = $region48
      $region47: #{tpu_custom_call.1} parent=5 // pred_region
        %s339 = ssub.s32 %s20, 2
        // Predicated region
        $region49: #{tpu_custom_call.1} parent=47 // pred_check
          %p340 = pneg %p96
        $region50: #{tpu_custom_call.1} parent=47 // pred_check_branch
          %342 = sbr.rel (%p340) target = $region52
        $region51: #{tpu_custom_call.1} parent=47 // pred_region
          %s343 = sand.u32 %s81, 1
          %s344 = scalar_lea.sflag [#allocation4], %s343
          %s345 = sand.u32 %s81, 1
          %s346 = smul.addr %s345, 8
          %s347 = scalar_lea.vmem [#allocation7], %s346
          %349 = dma.done %s344, 128
        $region52: #{tpu_custom_call.1} parent=47 // pred_fallthru
          _
        // Predicated region
        $region53: #{tpu_custom_call.1} parent=47 // pred_check
          %p350 = pneg %p122
        $region54: #{tpu_custom_call.1} parent=47 // pred_check_branch
          %352 = sbr.rel (%p350) target = $region56
        $region55: #{tpu_custom_call.1} parent=47 // pred_region
          %s353 = sand.u32 %s107, 1
          %s354 = scalar_lea.sflag [#allocation9], %s353
          %s355 = sand.u32 %s107, 1
          %s356 = smul.addr %s355, 8
          %s357 = scalar_lea.vmem [#allocation8], %s356
          %359 = dma.done %s354, 128
        $region56: #{tpu_custom_call.1} parent=47 // pred_fallthru
          _
      $region48: #{tpu_custom_call.1} parent=5 // pred_fallthru
        _
    $region6: #{tpu_custom_call.1} parent=1 // loop_footer
      %s24 = sadd.s32 1, %s20
    $region7: #{tpu_custom_call.1} parent=1 // loop_footer_branch
      %19 = sbr.rel target = $region3
    $region8: #{tpu_custom_call.1} parent=1 // loop_exit
      _
    %360 = vsyncpa [#allocation3], 1
    %s361 = scalar_lea.sflag [#allocation3], 1
    %362 = vsyncpa %s361, 1
    %363 = vsyncpa [#allocation6], 1
    %364 = vsyncpa [#allocation4], 1
    %s365 = scalar_lea.sflag [#allocation4], 1
    %366 = vsyncpa %s365, 1
    %367 = vsyncpa [#allocation9], 1
    %s368 = scalar_lea.sflag [#allocation9], 1
    %369 = vsyncpa %s368, 1

</llo_original>
